<compile_context>
chip_gen: v5e
topology: v5e:2x2
jax: 0.10.0
libtpu: 0.0.40
codegen_flags: <defaults>
</compile_context>

<pallas_src>
import jax
import jax.numpy as jnp
from jax import lax
from jax.experimental import pallas as pl
from jax.experimental.pallas import tpu as pltpu

MARGIN = 2.0
LOSS_EPS = 1e-9          # ContrastiveLoss.eps
PAIRWISE_EPS = 1e-6      # F.pairwise_distance default eps (added to the diff)
_MiB = 1024 * 1024


def _cdiv(a, b):
    return -(-a // b)


def _make_kernel(samples_per_row, n_tiles, tiles_per_core, margin):
    """Kernel factory; packing factor / tile counts / margin baked in."""
    P = samples_per_row

    def kernel(sel_ref, o1_ref, o2_ref, lbl_ref, out_ref, acc_ref):
        c = pl.program_id(0)           # core (parallel) axis
        i = pl.program_id(1)           # tile (reduction) axis

        @pl.when(i == 0)
        def _init():
            acc_ref[...] = jnp.zeros_like(acc_ref)

        # Un-clamped global tile index; tiles past n_tiles-1 are duplicates
        # produced by the rectangular (cores x tiles_per_core) grid and are
        # skipped (their DMA was clamped to a valid tile by the index_map).
        t = c * tiles_per_core + i

        @pl.when(t < n_tiles)
        def _accumulate():
            # Native-dtype tiles in; all math in f32 (v5e VPU has no bf16).
            o1 = o1_ref[...].astype(jnp.float32)
            o2 = o2_ref[...].astype(jnp.float32)
            diff = (o1 - o2) + PAIRWISE_EPS
            sq = diff * diff                                    # (tr, width)

            # Per-sample sum-of-squares via the resident block-diagonal
            # selector on the otherwise idle MXU (f32-accurate with HIGHEST).
            d2 = jnp.dot(sq, sel_ref[...],
                         preferred_element_type=jnp.float32,
                         precision=lax.Precision.HIGHEST)       # (tr, P)

            dist = jnp.sqrt(d2)                                 # pairwise distance
            hinge = jnp.maximum(margin - jnp.sqrt(dist + LOSS_EPS), 0.0)
            lbl = lbl_ref[...].astype(jnp.float32)              # (tr, P), 0/1
            losses = lbl * dist + (1.0 - lbl) * (hinge * hinge)

            # Vector-add accumulation; 0.5 and 1/B are applied in the wrapper.
            acc_ref[...] += jnp.sum(losses, axis=0, keepdims=True)   # (1, P)

        @pl.when(i == tiles_per_core - 1)
        def _finalize():
            out_ref[...] = jnp.zeros_like(out_ref)
            out_ref[0:1, 0:P] = acc_ref[...]

    return kernel


def contrastive_loss(output1, output2, label, *, margin=MARGIN, tile_rows=None):
    """Mean contrastive loss over a batch of embedding pairs (Pallas TPU)."""
    B, D = output1.shape
    assert output2.shape == (B, D)
    label = label.reshape(B)

    # --- lane-dense packing: P samples per row when D < 128 (free reshape) ---
    p_max = max(1, 128 // D) if D <= 128 else 1
    P = 1
    for p in range(min(p_max, B), 0, -1):
        if B % p == 0:
            P = p
            break
    width = P * D
    rows = B // P

    feat_dtype = output1.dtype
    itemsize = jnp.dtype(feat_dtype).itemsize

    # --- generation-aware tile / VMEM sizing ---------------------------------
    try:
        vmem_cap = int(pltpu.get_tpu_info().vmem_capacity_bytes)
    except Exception:
        vmem_cap = 64 * _MiB                      # conservative (v7x) fallback
    vmem_cap = max(32 * _MiB, min(vmem_cap, 128 * _MiB))
    vmem_limit = min(vmem_cap - 12 * _MiB, 100 * _MiB)
    stream_budget = vmem_limit - 12 * _MiB        # headroom for sel/acc/out/spills

    lane_w = ((max(width, 128) + 127) // 128) * 128
    # 2 feature streams x 2 pipeline buffers (native dtype) + bf16 label stream
    # (lane-padded to 128) x 2 buffers.
    bytes_per_row = 2 * 2 * lane_w * itemsize + 2 * 128 * 2
    row_cap = max(8, stream_budget // bytes_per_row)
    pack = max(8, 32 // itemsize)                 # sublane pack: f32->8, bf16->16

    if tile_rows is None:
        tr = max(pack, (row_cap // pack) * pack)
    else:
        tr = min(int(tile_rows), int(row_cap))
        tr = max(8, (tr // 8) * 8)

    if rows <= tr:
        tr = rows                                 # single full-extent tile
        n_tiles = 1
        rows_main = rows
    else:
        n_tiles = rows // tr                      # only full, in-bounds tiles
        rows_main = n_tiles * tr
    tail_rows = rows - rows_main                  # < tr rows, handled in JAX

    num_cores = 2 if n_tiles >= 2 else 1
    tiles_per_core = _cdiv(n_tiles, num_cores)

    # --- kernel operands (free reshapes; no padding copies) ------------------
    o1v = output1.reshape(rows, width)
    o2v = output2.reshape(rows, width)
    lblv = label.astype(jnp.bfloat16).reshape(rows, P)

    lane = jnp.arange(width, dtype=jnp.int32)[:, None]
    col = jnp.arange(P, dtype=jnp.int32)[None, :]
    sel = (lane // D == col).astype(jnp.float32)           # (width, P) selector

    kernel = _make_kernel(P, n_tiles, tiles_per_core, float(margin))

    def feat_map(c, i):
        # Clamp so duplicate tiles of the rectangular grid DMA valid data;
        # their contribution is skipped in-kernel via pl.when(t < n_tiles).
        return (jnp.minimum(c * tiles_per_core + i, n_tiles - 1), 0)

    part = pl.pallas_call(
        kernel,
        out_shape=jax.ShapeDtypeStruct((num_cores * 8, 128), jnp.float32),
        grid_spec=pltpu.PrefetchScalarGridSpec(
            num_scalar_prefetch=0,
            grid=(num_cores, tiles_per_core),
            in_specs=[
                pl.BlockSpec((width, P), lambda c, i: (0, 0)),   # resident selector
                pl.BlockSpec((tr, width), feat_map),
                pl.BlockSpec((tr, width), feat_map),
                pl.BlockSpec((tr, P), feat_map),                 # bf16 labels
            ],
            out_specs=pl.BlockSpec((8, 128), lambda c, i: (c, 0)),
            scratch_shapes=[pltpu.VMEM((1, P), jnp.float32)],
        ),
        compiler_params=pltpu.CompilerParams(
            dimension_semantics=("parallel", "arbitrary"),
            vmem_limit_bytes=int(vmem_limit),
        ),
    )(sel, o1v, o2v, lblv)

    total = jnp.sum(part)

    if tail_rows > 0:
        # Ragged tail (< one tile): plain JAX, fused by XLA; avoids padding /
        # copying the full embedding arrays just for a few leftover rows.
        s = rows_main * P
        o1t = output1[s:].astype(jnp.float32)
        o2t = output2[s:].astype(jnp.float32)
        lt = label[s:].astype(jnp.float32)
        dt = (o1t - o2t) + PAIRWISE_EPS
        d = jnp.sqrt(jnp.sum(dt * dt, axis=-1))
        hinge = jnp.maximum(margin - jnp.sqrt(d + LOSS_EPS), 0.0)
        total = total + jnp.sum(lt * d + (1.0 - lt) * hinge * hinge)

    return total * (0.5 / float(B))


def _reference(output1, output2, label, margin=MARGIN):
    # Pure-JAX reference mirroring the PyTorch forward, for validation.
    o1 = output1.astype(jnp.float32)
    o2 = output2.astype(jnp.float32)
    diff = (o1 - o2) + PAIRWISE_EPS
    d = jnp.sqrt(jnp.sum(diff * diff, axis=-1))
    lbl = label.astype(jnp.float32)
    hinge = jnp.maximum(margin - jnp.sqrt(d + LOSS_EPS), 0.0)
    losses = 0.5 * (lbl * d + (1.0 - lbl) * hinge ** 2)
    return jnp.mean(losses)


if __name__ == "__main__":
    key = jax.random.PRNGKey(0)
    k1, k2, k3, k4, k5, k6 = jax.random.split(key, 6)

    # Case 1: tiny f32 embeddings -> single lane-packed tile (P=4, grid (1,1)).
    B1, D1 = 8, 32
    a1 = jax.random.normal(k1, (B1, D1), dtype=jnp.float32)
    b1 = jax.random.normal(k2, (B1, D1), dtype=jnp.float32)
    l1 = jax.random.bernoulli(k3, 0.5, (B1,)).astype(jnp.int32)
    loss1 = jax.block_until_ready(contrastive_loss(a1, b1, l1))
    ref1 = _reference(a1, b1, l1)
    assert jnp.allclose(loss1, ref1, rtol=1e-4, atol=1e-5), (loss1, ref1)

    # Case 2: bf16 embeddings with forced small tiles -> 2-core parallel split
    # (one clamped/skipped duplicate tile on core 1) plus a ragged JAX tail.
    B2, D2 = 104, 32
    a2 = jax.random.normal(k4, (B2, D2), dtype=jnp.float32).astype(jnp.bfloat16)
    b2 = jax.random.normal(k5, (B2, D2), dtype=jnp.float32).astype(jnp.bfloat16)
    l2 = jax.random.bernoulli(k6, 0.5, (B2,)).astype(jnp.int32)
    loss2 = jax.block_until_ready(contrastive_loss(a2, b2, l2, tile_rows=8))
    ref2 = _reference(a2, b2, l2)
    assert jnp.allclose(loss2, ref2, rtol=1e-4, atol=1e-5), (loss2, ref2)

    print("KERNEL_OK")
</pallas_src>

<mosaic_0001>
module attributes {stable_mosaic.version = 11 : i64} {
  func.func @kernel(%arg0: i32, %arg1: i32, %arg2: memref<128x4xf32, #tpu.memory_space<vmem>>, %arg3: memref<2x128xf32, #tpu.memory_space<vmem>>, %arg4: memref<2x128xf32, #tpu.memory_space<vmem>>, %arg5: memref<2x4xbf16, #tpu.memory_space<vmem>>, %arg6: memref<8x128xf32, #tpu.memory_space<vmem>>, %arg7: memref<1x4xf32, #tpu.memory_space<vmem>>) attributes {dimension_semantics = [#tpu.dimension_semantics<parallel>, #tpu.dimension_semantics<arbitrary>], iteration_bounds = array<i64: 1, 1>, scalar_prefetch = 0 : i64, scratch_operands = 1 : i64, tpu.core_type = #tpu.core_type<tc>, window_params = [{pipeline_mode = #tpu.pipeline_mode<synchronous>, transform_indices = @transform_0, window_bounds = array<i64: 128, 4>}, {transform_indices = @transform_1, window_bounds = array<i64: 2, 128>}, {transform_indices = @transform_2, window_bounds = array<i64: 2, 128>}, {transform_indices = @transform_3, window_bounds = array<i64: 2, 4>}, {transform_indices = @transform_4, window_bounds = array<i64: 8, 128>}]} {
    %c0_i32 = arith.constant 0 : i32
    %0 = arith.cmpi eq, %arg1, %c0_i32 : i32
    %1 = arith.extui %0 : i1 to i32
    %c0_i32_0 = arith.constant 0 : i32
    %2 = arith.cmpi ne, %1, %c0_i32_0 : i32
    scf.if %2 {
      %cst = arith.constant 0.000000e+00 : f32
      %11 = vector.broadcast %cst : f32 to vector<1x4xf32>
      %c0 = arith.constant 0 : index
      %c0_5 = arith.constant 0 : index
      %12 = vector.load %arg7[%c0, %c0_5] : memref<1x4xf32, #tpu.memory_space<vmem>>, vector<1x4xf32>
      tpu.vector_store %arg7[%c0, %c0_5], %11 {strides = array<i32>} : memref<1x4xf32, #tpu.memory_space<vmem>>, vector<1x4xf32>,
    } else {
    }
    %c1_i32 = arith.constant 1 : i32
    %3 = arith.muli %arg0, %c1_i32 : i32
    %4 = arith.addi %3, %arg1 : i32
    %c1_i32_1 = arith.constant 1 : i32
    %5 = arith.cmpi slt, %4, %c1_i32_1 : i32
    %6 = arith.extui %5 : i1 to i32
    %c0_i32_2 = arith.constant 0 : i32
    %7 = arith.cmpi ne, %6, %c0_i32_2 : i32
    scf.if %7 {
      %c0 = arith.constant 0 : index
      %c0_5 = arith.constant 0 : index
      %11 = vector.load %arg3[%c0, %c0_5] : memref<2x128xf32, #tpu.memory_space<vmem>>, vector<2x128xf32>
      %c0_6 = arith.constant 0 : index
      %c0_7 = arith.constant 0 : index
      %12 = vector.load %arg4[%c0_6, %c0_7] : memref<2x128xf32, #tpu.memory_space<vmem>>, vector<2x128xf32>
      %13 = arith.subf %11, %12 : vector<2x128xf32>
      %cst = arith.constant 9.99999997E-7 : f32
      %14 = vector.broadcast %cst : f32 to vector<2x128xf32>
      %15 = arith.addf %13, %14 : vector<2x128xf32>
      %16 = arith.mulf %15, %15 : vector<2x128xf32>
      %c0_8 = arith.constant 0 : index
      %c0_9 = arith.constant 0 : index
      %17 = vector.load %arg2[%c0_8, %c0_9] : memref<128x4xf32, #tpu.memory_space<vmem>>, vector<128x4xf32>
      %cst_10 = arith.constant dense<0.000000e+00> : vector<2x4xf32>
      %18 = tpu.matmul %16, %17, %cst_10 {dimension_numbers = #tpu.dot_dimension_numbers<[1], [0], [0], [1], [0, 0, 1, 1], [], []>, precision = #tpu.contract_precision<fp32>} : vector<2x128xf32>, vector<128x4xf32>, vector<2x4xf32> -> vector<2x4xf32>
      %19 = math.sqrt %18 : vector<2x4xf32>
      %cst_11 = arith.constant 9.99999971E-10 : f32
      %20 = vector.broadcast %cst_11 : f32 to vector<2x4xf32>
      %21 = arith.addf %19, %20 : vector<2x4xf32>
      %22 = math.sqrt %21 : vector<2x4xf32>
      %cst_12 = arith.constant 2.000000e+00 : f32
      %23 = vector.broadcast %cst_12 : f32 to vector<2x4xf32>
      %24 = arith.subf %23, %22 : vector<2x4xf32>
      %cst_13 = arith.constant 0.000000e+00 : f32
      %25 = vector.broadcast %cst_13 : f32 to vector<2x4xf32>
      %26 = arith.maximumf %24, %25 : vector<2x4xf32>
      %c0_14 = arith.constant 0 : index
      %c0_15 = arith.constant 0 : index
      %27 = vector.load %arg5[%c0_14, %c0_15] : memref<2x4xbf16, #tpu.memory_space<vmem>>, vector<2x4xbf16>
      %28 = arith.extf %27 : vector<2x4xbf16> to vector<2x4xf32>
      %29 = arith.mulf %28, %19 : vector<2x4xf32>
      %cst_16 = arith.constant 1.000000e+00 : f32
      %30 = vector.broadcast %cst_16 : f32 to vector<2x4xf32>
      %31 = arith.subf %30, %28 : vector<2x4xf32>
      %32 = arith.mulf %26, %26 : vector<2x4xf32>
      %33 = arith.mulf %31, %32 : vector<2x4xf32>
      %34 = arith.addf %29, %33 : vector<2x4xf32>
      %c0_17 = arith.constant 0 : index
      %c0_18 = arith.constant 0 : index
      %35 = vector.load %arg7[%c0_17, %c0_18] : memref<1x4xf32, #tpu.memory_space<vmem>>, vector<1x4xf32>
      %cst_19 = arith.constant dense<0.000000e+00> : vector<4xf32>
      %36 = vector.multi_reduction <add>, %34, %cst_19 [0] : vector<2x4xf32> to vector<4xf32>
      %37 = vector.shape_cast %36 : vector<4xf32> to vector<1x4xf32>
      %38 = arith.addf %35, %37 : vector<1x4xf32>
      %c0_20 = arith.constant 0 : index
      %c0_21 = arith.constant 0 : index
      %39 = vector.load %arg7[%c0_20, %c0_21] : memref<1x4xf32, #tpu.memory_space<vmem>>, vector<1x4xf32>
      tpu.vector_store %arg7[%c0_20, %c0_21], %38 {strides = array<i32>} : memref<1x4xf32, #tpu.memory_space<vmem>>, vector<1x4xf32>,
    } else {
    }
    %c0_i32_3 = arith.constant 0 : i32
    %8 = arith.cmpi eq, %arg1, %c0_i32_3 : i32
    %9 = arith.extui %8 : i1 to i32
    %c0_i32_4 = arith.constant 0 : i32
    %10 = arith.cmpi ne, %9, %c0_i32_4 : i32
    scf.if %10 {
      %cst = arith.constant 0.000000e+00 : f32
      %11 = vector.broadcast %cst : f32 to vector<8x128xf32>
      %c0 = arith.constant 0 : index
      %c0_5 = arith.constant 0 : index
      %12 = vector.load %arg6[%c0, %c0_5] : memref<8x128xf32, #tpu.memory_space<vmem>>, vector<8x128xf32>
      tpu.vector_store %arg6[%c0, %c0_5], %11 {strides = array<i32>} : memref<8x128xf32, #tpu.memory_space<vmem>>, vector<8x128xf32>,
      %c0_6 = arith.constant 0 : index
      %c0_7 = arith.constant 0 : index
      %13 = vector.load %arg7[%c0_6, %c0_7] : memref<1x4xf32, #tpu.memory_space<vmem>>, vector<1x4xf32>
      %c0_8 = arith.constant 0 : index
      %c0_9 = arith.constant 0 : index
      %14 = vector.load %arg6[%c0_8, %c0_9] : memref<8x128xf32, #tpu.memory_space<vmem>>, vector<1x4xf32>
      tpu.vector_store %arg6[%c0_8, %c0_9], %13 {strides = array<i32>} : memref<8x128xf32, #tpu.memory_space<vmem>>, vector<1x4xf32>,
    } else {
    }
    return
  }
  func.func @transform_0(%arg0: i32, %arg1: i32) -> (i32, i32) {
    %c0_i32 = arith.constant 0 : i32
    %c0_i32_0 = arith.constant 0 : i32
    %c0_i32_1 = arith.constant 0 : i32
    return %c0_i32, %c0_i32_0 : i32, i32
  }
  func.func @transform_1(%arg0: i32, %arg1: i32) -> (i32, i32) {
    %c1_i32 = arith.constant 1 : i32
    %0 = arith.muli %arg0, %c1_i32 : i32
    %1 = arith.addi %0, %arg1 : i32
    %c0_i32 = arith.constant 0 : i32
    %2 = arith.minsi %1, %c0_i32 : i32
    %c0_i32_0 = arith.constant 0 : i32
    %c0_i32_1 = arith.constant 0 : i32
    return %2, %c0_i32_0 : i32, i32
  }
  func.func @transform_2(%arg0: i32, %arg1: i32) -> (i32, i32) {
    %c1_i32 = arith.constant 1 : i32
    %0 = arith.muli %arg0, %c1_i32 : i32
    %1 = arith.addi %0, %arg1 : i32
    %c0_i32 = arith.constant 0 : i32
    %2 = arith.minsi %1, %c0_i32 : i32
    %c0_i32_0 = arith.constant 0 : i32
    %c0_i32_1 = arith.constant 0 : i32
    return %2, %c0_i32_0 : i32, i32
  }
  func.func @transform_3(%arg0: i32, %arg1: i32) -> (i32, i32) {
    %c1_i32 = arith.constant 1 : i32
    %0 = arith.muli %arg0, %c1_i32 : i32
    %1 = arith.addi %0, %arg1 : i32
    %c0_i32 = arith.constant 0 : i32
    %2 = arith.minsi %1, %c0_i32 : i32
    %c0_i32_0 = arith.constant 0 : i32
    %c0_i32_1 = arith.constant 0 : i32
    return %2, %c0_i32_0 : i32, i32
  }
  func.func @transform_4(%arg0: i32, %arg1: i32) -> (i32, i32) {
    %c0_i32 = arith.constant 0 : i32
    %c0_i32_0 = arith.constant 0 : i32
    return %arg0, %c0_i32 : i32, i32
  }
}

</mosaic_0001>

<llo_original>
// kernel: tpu_custom_call.1
$region0: #{tpu_custom_call.1}
  #allocation0 [shape = 'u32[]', space=smem, size = 0x4, offset = 0x4, fixed_abs, tag = 'smem constant byte address 0x4 - core index']
  #allocation1 [shape = 'u32[72,128]{1,0:T(1,128)}', space=vmem, size = 0x9000, scoped, tag = 'internal scratch']
  #allocation2 [shape = 'f32[1,4]{1,0:T(1,128)}', space=vmem, size = 0x200, scoped, tag = 'scratch operand']
  %s0 = inlined_call_operand.vmem [shape: f32[128,4], index: 0, kind: input, shape index: {}]
  %s1 = inlined_call_operand.vmem [shape: f32[2,128], index: 1, kind: input, shape index: {}]
  %s2 = inlined_call_operand.vmem [shape: f32[2,128], index: 2, kind: input, shape index: {}]
  %s3 = inlined_call_operand.vmem [shape: bf16[2,4], index: 3, kind: input, shape index: {}]
  %s4 = inlined_call_operand.hbm [shape: f32[8,128], index: 4, kind: output, shape index: {}]
  %s5 = sld [smem:[#allocation0]]
  $region38: #{tpu_custom_call.1} parent=0
    _
  %s7 = ssub.s32 1, %s5
  %s8 = scalar_select 0, %s7, %s5
  $region1: #{tpu_custom_call.1} parent=0
    #allocation3 [shape = 'u8[4096]{0}', space=vmem, size = 0x1000, scoped, tag = 'output window, operand 0, single buffered']
    #allocation4 [shape = 's32[1]{0}', space=sflag, size = 0x4, scoped, tag = 'scoped memory for tpu_custom_call.1']
    %9 = vsyncpa [#allocation4], 0
    // Predicated region
    $region2: #{tpu_custom_call.1} parent=1 // pred_check
      _
    $region3: #{tpu_custom_call.1} parent=1 // pred_check_branch
      %11 = sbr.rel (0) target = $region5
    $region4: #{tpu_custom_call.1} parent=1 // pred_region
      _
    $region5: #{tpu_custom_call.1} parent=1 // pred_fallthru
      _
    // Predicated region
    $region6: #{tpu_custom_call.1} parent=1 // pred_check
      _
    $region7: #{tpu_custom_call.1} parent=1 // pred_check_branch
      %13 = sbr.rel (0) target = $region9
    $region8: #{tpu_custom_call.1} parent=1 // pred_region
      %s14 = sadd.s32 0, 0
      %p15 = scmp.lt.s32.totalorder %s14, 0
      %s16 = scalar_select %p15, %s14, 0
      %p17 = scmp.lt.s32.totalorder %s16, 0
      %s18 = scalar_select %p17, %s16, 0
      %s19 = smul.addr %s18, 2
      %s20 = scalar_lea.vmem %s1, %s19
      %s21 = sadd.s32 0, 0
      %p22 = scmp.lt.s32.totalorder %s21, 0
      %s23 = scalar_select %p22, %s21, 0
    $region9: #{tpu_custom_call.1} parent=1 // pred_fallthru
      _
    // Predicated region
    $region10: #{tpu_custom_call.1} parent=1 // pred_check
      _
    $region11: #{tpu_custom_call.1} parent=1 // pred_check_branch
      %25 = sbr.rel (0) target = $region13
    $region12: #{tpu_custom_call.1} parent=1 // pred_region
      %s26 = sadd.s32 0, 0
      %p27 = scmp.lt.s32.totalorder %s26, 0
      %s28 = scalar_select %p27, %s26, 0
      %p29 = scmp.lt.s32.totalorder %s28, 0
      %s30 = scalar_select %p29, %s28, 0
      %s31 = smul.addr %s30, 2
      %s32 = scalar_lea.vmem %s2, %s31
      %s33 = sadd.s32 0, 0
      %p34 = scmp.lt.s32.totalorder %s33, 0
      %s35 = scalar_select %p34, %s33, 0
    $region13: #{tpu_custom_call.1} parent=1 // pred_fallthru
      _
    // Predicated region
    $region14: #{tpu_custom_call.1} parent=1 // pred_check
      _
    $region15: #{tpu_custom_call.1} parent=1 // pred_check_branch
      %37 = sbr.rel (0) target = $region17
    $region16: #{tpu_custom_call.1} parent=1 // pred_region
      %s38 = sadd.s32 0, 0
      %p39 = scmp.lt.s32.totalorder %s38, 0
      %s40 = scalar_select %p39, %s38, 0
      %p41 = scmp.lt.s32.totalorder %s40, 0
      %s42 = scalar_select %p41, %s40, 0
      %s43 = scalar_lea.vmem %s3, %s42
      %s44 = sadd.s32 0, 0
      %p45 = scmp.lt.s32.totalorder %s44, 0
      %s46 = scalar_select %p45, %s44, 0
    $region17: #{tpu_custom_call.1} parent=1 // pred_fallthru
      _
    %s47 = sadd.s32 0, 0
    %p48 = scmp.lt.s32.totalorder %s47, 0
    %s49 = scalar_select %p48, %s47, 0
    %p50 = scmp.lt.s32.totalorder %s49, 0
    %s51 = scalar_select %p50, %s49, 0
    %s52 = smul.addr %s51, 2
    %s53 = scalar_lea.vmem %s1, %s52
    %s54 = sadd.s32 0, 0
    %p55 = scmp.lt.s32.totalorder %s54, 0
    %s56 = scalar_select %p55, %s54, 0
    %p57 = scmp.lt.s32.totalorder %s56, 0
    %s58 = scalar_select %p57, %s56, 0
    %s59 = smul.addr %s58, 2
    %s60 = scalar_lea.vmem %s2, %s59
    %s61 = sadd.s32 0, 0
    %p62 = scmp.lt.s32.totalorder %s61, 0
    %s63 = scalar_select %p62, %s61, 0
    %p64 = scmp.lt.s32.totalorder %s63, 0
    %s65 = scalar_select %p64, %s63, 0
    %s66 = scalar_lea.vmem %s3, %s65
    %s67 = sadd.s32 0, 0
    %p68 = scmp.lt.s32.totalorder %s67, 0
    %s69 = scalar_select %p68, %s67, 0
    %p70 = scmp.lt.s32.totalorder %s69, 0
    %s71 = scalar_select %p70, %s69, 0
    %s72 = smul.addr %s71, 2
    %s73 = scalar_lea.vmem %s1, %s72
    %s74 = sadd.s32 0, 0
    %p75 = scmp.lt.s32.totalorder %s74, 0
    %s76 = scalar_select %p75, %s74, 0
    %s77 = sadd.s32 0, 0
    %p78 = scmp.lt.s32.totalorder %s77, 0
    %s79 = scalar_select %p78, %s77, 0
    %p80 = scmp.lt.s32.totalorder %s79, 0
    %s81 = scalar_select %p80, %s79, 0
    %s82 = smul.addr %s81, 2
    %s83 = scalar_lea.vmem %s2, %s82
    %s84 = sadd.s32 0, 0
    %p85 = scmp.lt.s32.totalorder %s84, 0
    %s86 = scalar_select %p85, %s84, 0
    %s87 = sadd.s32 0, 0
    %p88 = scmp.lt.s32.totalorder %s87, 0
    %s89 = scalar_select %p88, %s87, 0
    %p90 = scmp.lt.s32.totalorder %s89, 0
    %s91 = scalar_select %p90, %s89, 0
    %s92 = scalar_lea.vmem %s3, %s91
    %s93 = sadd.s32 0, 0
    %p94 = scmp.lt.s32.totalorder %s93, 0
    %s95 = scalar_select %p94, %s93, 0
    %p96 = scmp.eq.s32.totalorder 0, 0
    // Predicated region
    $region18: #{tpu_custom_call.1} parent=1 // pred_check
      %p97 = pneg %p96
    $region19: #{tpu_custom_call.1} parent=1 // pred_check_branch
      %99 = sbr.rel (%p97) target = $region21
    $region20: #{tpu_custom_call.1} parent=1 // pred_region
      %vm100 = vcmask 24576
      %101 = vst.msk [vmem:[#allocation2] sm:$0x1] %vm100, 0.0
    $region21: #{tpu_custom_call.1} parent=1 // pred_fallthru
      _
    %s102 = sadd.s32 0, 0
    %p103 = scmp.lt.s32.totalorder %s102, 1
    // Predicated region
    $region22: #{tpu_custom_call.1} parent=1 // pred_check
      %p104 = pneg %p103
    $region23: #{tpu_custom_call.1} parent=1 // pred_check_branch
      %106 = sbr.rel (%p104) target = $region25
    $region24: #{tpu_custom_call.1} parent=1 // pred_region
      %v107 = vld [vmem:[%s73] sm:$0x3]
      %v108 = vld [vmem:[%s83] sm:$0x3]
      %v109 = vsub.f32 %v107, %v108
      %v110 = vadd.f32 %v109, 1e-06
      %v111 = vmul.f32 %v110, %v110
      %v112 = vld [vmem:[%s0] sm:$0xff]
      %v113 = vld [vmem:[%s0 + $0x8] sm:$0xff]
      %v114 = vld [vmem:[%s0 + $0x10] sm:$0xff]
      %v115 = vld [vmem:[%s0 + $0x18] sm:$0xff]
      %v116 = vld [vmem:[%s0 + $0x20] sm:$0xff]
      %v117 = vld [vmem:[%s0 + $0x28] sm:$0xff]
      %v118 = vld [vmem:[%s0 + $0x30] sm:$0xff]
      %v119 = vld [vmem:[%s0 + $0x38] sm:$0xff]
      %v120 = vld [vmem:[%s0 + $0x40] sm:$0xff]
      %v121 = vld [vmem:[%s0 + $0x48] sm:$0xff]
      %v122 = vld [vmem:[%s0 + $0x50] sm:$0xff]
      %v123 = vld [vmem:[%s0 + $0x58] sm:$0xff]
      %v124 = vld [vmem:[%s0 + $0x60] sm:$0xff]
      %v125 = vld [vmem:[%s0 + $0x68] sm:$0xff]
      %v126 = vld [vmem:[%s0 + $0x70] sm:$0xff]
      %v127 = vld [vmem:[%s0 + $0x78] sm:$0xff]
      %v128 = vand.u32 %v127, 4294901760
      %129 = vmatpush.msra.mxu0 %v128
      %v130 = vand.u32 %v126, 4294901760
      %131 = vmatpush.msra.mxu0 %v130
      %v132 = vand.u32 %v125, 4294901760
      %133 = vmatpush.msra.mxu0 %v132
      %v134 = vand.u32 %v124, 4294901760
      %135 = vmatpush.msra.mxu0 %v134
      %v136 = vand.u32 %v123, 4294901760
      %137 = vmatpush.msra.mxu0 %v136
      %v138 = vand.u32 %v122, 4294901760
      %139 = vmatpush.msra.mxu0 %v138
      %v140 = vand.u32 %v121, 4294901760
      %141 = vmatpush.msra.mxu0 %v140
      %v142 = vand.u32 %v120, 4294901760
      %143 = vmatpush.msra.mxu0 %v142
      %v144 = vand.u32 %v119, 4294901760
      %145 = vmatpush.msra.mxu0 %v144
      %v146 = vand.u32 %v118, 4294901760
      %147 = vmatpush.msra.mxu0 %v146
      %v148 = vand.u32 %v117, 4294901760
      %149 = vmatpush.msra.mxu0 %v148
      %v150 = vand.u32 %v116, 4294901760
      %151 = vmatpush.msra.mxu0 %v150
      %v152 = vand.u32 %v115, 4294901760
      %153 = vmatpush.msra.mxu0 %v152
      %v154 = vand.u32 %v114, 4294901760
      %155 = vmatpush.msra.mxu0 %v154
      %v156 = vand.u32 %v113, 4294901760
      %157 = vmatpush.msra.mxu0 %v156
      %v158 = vand.u32 %v112, 4294901760
      %159 = vmatpush.msra.mxu0 %v158
      %v160 = vand.u32 %v111, 4294901760
      %v161 = vsub.f32 %v111, %v160
      %v162 = vand.u32 %v161, 4294901760
      %v163 = vsub.f32 %v161, %v162
      %v164 = vand.u32 %v163, 4294901760
      %165 = vmatmul.f32.gmra.mxu0 %v164
      %v166 = vpop.f32.mrf.mxu0
      %v167 = vadd.f32 0.0, %v166
      %168 = vdwg.mxu0
      %v169 = vand.u32 %v127, 4294901760
      %v170 = vsub.f32 %v127, %v169
      %v171 = vand.u32 %v170, 4294901760
      %v172 = vsub.f32 %v170, %v171
      %v173 = vand.u32 %v172, 4294901760
      %174 = vmatpush.msra.mxu0 %v173
      %v175 = vand.u32 %v126, 4294901760
      %v176 = vsub.f32 %v126, %v175
      %v177 = vand.u32 %v176, 4294901760
      %v178 = vsub.f32 %v176, %v177
      %v179 = vand.u32 %v178, 4294901760
      %180 = vmatpush.msra.mxu0 %v179
      %v181 = vand.u32 %v125, 4294901760
      %v182 = vsub.f32 %v125, %v181
      %v183 = vand.u32 %v182, 4294901760
      %v184 = vsub.f32 %v182, %v183
      %v185 = vand.u32 %v184, 4294901760
      %186 = vmatpush.msra.mxu0 %v185
      %v187 = vand.u32 %v124, 4294901760
      %v188 = vsub.f32 %v124, %v187
      %v189 = vand.u32 %v188, 4294901760
      %v190 = vsub.f32 %v188, %v189
      %v191 = vand.u32 %v190, 4294901760
      %192 = vmatpush.msra.mxu0 %v191
      %v193 = vand.u32 %v123, 4294901760
      %v194 = vsub.f32 %v123, %v193
      %v195 = vand.u32 %v194, 4294901760
      %v196 = vsub.f32 %v194, %v195
      %v197 = vand.u32 %v196, 4294901760
      %198 = vmatpush.msra.mxu0 %v197
      %v199 = vand.u32 %v122, 4294901760
      %v200 = vsub.f32 %v122, %v199
      %v201 = vand.u32 %v200, 4294901760
      %v202 = vsub.f32 %v200, %v201
      %v203 = vand.u32 %v202, 4294901760
      %204 = vmatpush.msra.mxu0 %v203
      %v205 = vand.u32 %v121, 4294901760
      %v206 = vsub.f32 %v121, %v205
      %v207 = vand.u32 %v206, 4294901760
      %v208 = vsub.f32 %v206, %v207
      %v209 = vand.u32 %v208, 4294901760
      %210 = vmatpush.msra.mxu0 %v209
      %v211 = vand.u32 %v120, 4294901760
      %v212 = vsub.f32 %v120, %v211
      %v213 = vand.u32 %v212, 4294901760
      %v214 = vsub.f32 %v212, %v213
      %v215 = vand.u32 %v214, 4294901760
      %216 = vmatpush.msra.mxu0 %v215
      %v217 = vand.u32 %v119, 4294901760
      %v218 = vsub.f32 %v119, %v217
      %v219 = vand.u32 %v218, 4294901760
      %v220 = vsub.f32 %v218, %v219
      %v221 = vand.u32 %v220, 4294901760
      %222 = vmatpush.msra.mxu0 %v221
      %v223 = vand.u32 %v118, 4294901760
      %v224 = vsub.f32 %v118, %v223
      %v225 = vand.u32 %v224, 4294901760
      %v226 = vsub.f32 %v224, %v225
      %v227 = vand.u32 %v226, 4294901760
      %228 = vmatpush.msra.mxu0 %v227
      %v229 = vand.u32 %v117, 4294901760
      %v230 = vsub.f32 %v117, %v229
      %v231 = vand.u32 %v230, 4294901760
      %v232 = vsub.f32 %v230, %v231
      %v233 = vand.u32 %v232, 4294901760
      %234 = vmatpush.msra.mxu0 %v233
      %v235 = vand.u32 %v116, 4294901760
      %v236 = vsub.f32 %v116, %v235
      %v237 = vand.u32 %v236, 4294901760
      %v238 = vsub.f32 %v236, %v237
      %v239 = vand.u32 %v238, 4294901760
      %240 = vmatpush.msra.mxu0 %v239
      %v241 = vand.u32 %v115, 4294901760
      %v242 = vsub.f32 %v115, %v241
      %v243 = vand.u32 %v242, 4294901760
      %v244 = vsub.f32 %v242, %v243
      %v245 = vand.u32 %v244, 4294901760
      %246 = vmatpush.msra.mxu0 %v245
      %v247 = vand.u32 %v114, 4294901760
      %v248 = vsub.f32 %v114, %v247
      %v249 = vand.u32 %v248, 4294901760
      %v250 = vsub.f32 %v248, %v249
      %v251 = vand.u32 %v250, 4294901760
      %252 = vmatpush.msra.mxu0 %v251
      %v253 = vand.u32 %v113, 4294901760
      %v254 = vsub.f32 %v113, %v253
      %v255 = vand.u32 %v254, 4294901760
      %v256 = vsub.f32 %v254, %v255
      %v257 = vand.u32 %v256, 4294901760
      %258 = vmatpush.msra.mxu0 %v257
      %v259 = vand.u32 %v112, 4294901760
      %v260 = vsub.f32 %v112, %v259
      %v261 = vand.u32 %v260, 4294901760
      %v262 = vsub.f32 %v260, %v261
      %v263 = vand.u32 %v262, 4294901760
      %264 = vmatpush.msra.mxu0 %v263
      %v265 = vand.u32 %v111, 4294901760
      %266 = vmatmul.f32.gmra.mxu0 %v265
      %v267 = vpop.f32.mrf.mxu0
      %v268 = vadd.f32 %v167, %v267
      %269 = vdwg.mxu0
      %v270 = vand.u32 %v127, 4294901760
      %v271 = vsub.f32 %v127, %v270
      %272 = vmatpush.msra.mxu0 %v271
      %v273 = vand.u32 %v126, 4294901760
      %v274 = vsub.f32 %v126, %v273
      %275 = vmatpush.msra.mxu0 %v274
      %v276 = vand.u32 %v125, 4294901760
      %v277 = vsub.f32 %v125, %v276
      %278 = vmatpush.msra.mxu0 %v277
      %v279 = vand.u32 %v124, 4294901760
      %v280 = vsub.f32 %v124, %v279
      %281 = vmatpush.msra.mxu0 %v280
      %v282 = vand.u32 %v123, 4294901760
      %v283 = vsub.f32 %v123, %v282
      %284 = vmatpush.msra.mxu0 %v283
      %v285 = vand.u32 %v122, 4294901760
      %v286 = vsub.f32 %v122, %v285
      %287 = vmatpush.msra.mxu0 %v286
      %v288 = vand.u32 %v121, 4294901760
      %v289 = vsub.f32 %v121, %v288
      %290 = vmatpush.msra.mxu0 %v289
      %v291 = vand.u32 %v120, 4294901760
      %v292 = vsub.f32 %v120, %v291
      %293 = vmatpush.msra.mxu0 %v292
      %v294 = vand.u32 %v119, 4294901760
      %v295 = vsub.f32 %v119, %v294
      %296 = vmatpush.msra.mxu0 %v295
      %v297 = vand.u32 %v118, 4294901760
      %v298 = vsub.f32 %v118, %v297
      %299 = vmatpush.msra.mxu0 %v298
      %v300 = vand.u32 %v117, 4294901760
      %v301 = vsub.f32 %v117, %v300
      %302 = vmatpush.msra.mxu0 %v301
      %v303 = vand.u32 %v116, 4294901760
      %v304 = vsub.f32 %v116, %v303
      %305 = vmatpush.msra.mxu0 %v304
      %v306 = vand.u32 %v115, 4294901760
      %v307 = vsub.f32 %v115, %v306
      %308 = vmatpush.msra.mxu0 %v307
      %v309 = vand.u32 %v114, 4294901760
      %v310 = vsub.f32 %v114, %v309
      %311 = vmatpush.msra.mxu0 %v310
      %v312 = vand.u32 %v113, 4294901760
      %v313 = vsub.f32 %v113, %v312
      %314 = vmatpush.msra.mxu0 %v313
      %v315 = vand.u32 %v112, 4294901760
      %v316 = vsub.f32 %v112, %v315
      %317 = vmatpush.msra.mxu0 %v316
      %v318 = vand.u32 %v111, 4294901760
      %v319 = vsub.f32 %v111, %v318
      %320 = vmatmul.f32.gmra.mxu0 %v319
      %v321 = vpop.f32.mrf.mxu0
      %v322 = vadd.f32 %v268, %v321
      %323 = vdwg.mxu0
      %v324 = vand.u32 %v127, 4294901760
      %325 = vmatpush.msra.mxu0 %v324
      %v326 = vand.u32 %v126, 4294901760
      %327 = vmatpush.msra.mxu0 %v326
      %v328 = vand.u32 %v125, 4294901760
      %329 = vmatpush.msra.mxu0 %v328
      %v330 = vand.u32 %v124, 4294901760
      %331 = vmatpush.msra.mxu0 %v330
      %v332 = vand.u32 %v123, 4294901760
      %333 = vmatpush.msra.mxu0 %v332
      %v334 = vand.u32 %v122, 4294901760
      %335 = vmatpush.msra.mxu0 %v334
      %v336 = vand.u32 %v121, 4294901760
      %337 = vmatpush.msra.mxu0 %v336
      %v338 = vand.u32 %v120, 4294901760
      %339 = vmatpush.msra.mxu0 %v338
      %v340 = vand.u32 %v119, 4294901760
      %341 = vmatpush.msra.mxu0 %v340
      %v342 = vand.u32 %v118, 4294901760
      %343 = vmatpush.msra.mxu0 %v342
      %v344 = vand.u32 %v117, 4294901760
      %345 = vmatpush.msra.mxu0 %v344
      %v346 = vand.u32 %v116, 4294901760
      %347 = vmatpush.msra.mxu0 %v346
      %v348 = vand.u32 %v115, 4294901760
      %349 = vmatpush.msra.mxu0 %v348
      %v350 = vand.u32 %v114, 4294901760
      %351 = vmatpush.msra.mxu0 %v350
      %v352 = vand.u32 %v113, 4294901760
      %353 = vmatpush.msra.mxu0 %v352
      %v354 = vand.u32 %v112, 4294901760
      %355 = vmatpush.msra.mxu0 %v354
      %v356 = vand.u32 %v111, 4294901760
      %v357 = vsub.f32 %v111, %v356
      %v358 = vand.u32 %v357, 4294901760
      %359 = vmatmul.f32.gmra.mxu0 %v358
      %v360 = vpop.f32.mrf.mxu0
      %v361 = vadd.f32 %v322, %v360
      %362 = vdwg.mxu0
      %v363 = vand.u32 %v127, 4294901760
      %v364 = vsub.f32 %v127, %v363
      %v365 = vand.u32 %v364, 4294901760
      %366 = vmatpush.msra.mxu0 %v365
      %v367 = vand.u32 %v126, 4294901760
      %v368 = vsub.f32 %v126, %v367
      %v369 = vand.u32 %v368, 4294901760
      %370 = vmatpush.msra.mxu0 %v369
      %v371 = vand.u32 %v125, 4294901760
      %v372 = vsub.f32 %v125, %v371
      %v373 = vand.u32 %v372, 4294901760
      %374 = vmatpush.msra.mxu0 %v373
      %v375 = vand.u32 %v124, 4294901760
      %v376 = vsub.f32 %v124, %v375
      %v377 = vand.u32 %v376, 4294901760
      %378 = vmatpush.msra.mxu0 %v377
      %v379 = vand.u32 %v123, 4294901760
      %v380 = vsub.f32 %v123, %v379
      %v381 = vand.u32 %v380, 4294901760
      %382 = vmatpush.msra.mxu0 %v381
      %v383 = vand.u32 %v122, 4294901760
      %v384 = vsub.f32 %v122, %v383
      %v385 = vand.u32 %v384, 4294901760
      %386 = vmatpush.msra.mxu0 %v385
      %v387 = vand.u32 %v121, 4294901760
      %v388 = vsub.f32 %v121, %v387
      %v389 = vand.u32 %v388, 4294901760
      %390 = vmatpush.msra.mxu0 %v389
      %v391 = vand.u32 %v120, 4294901760
      %v392 = vsub.f32 %v120, %v391
      %v393 = vand.u32 %v392, 4294901760
      %394 = vmatpush.msra.mxu0 %v393
      %v395 = vand.u32 %v119, 4294901760
      %v396 = vsub.f32 %v119, %v395
      %v397 = vand.u32 %v396, 4294901760
      %398 = vmatpush.msra.mxu0 %v397
      %v399 = vand.u32 %v118, 4294901760
      %v400 = vsub.f32 %v118, %v399
      %v401 = vand.u32 %v400, 4294901760
      %402 = vmatpush.msra.mxu0 %v401
      %v403 = vand.u32 %v117, 4294901760
      %v404 = vsub.f32 %v117, %v403
      %v405 = vand.u32 %v404, 4294901760
      %406 = vmatpush.msra.mxu0 %v405
      %v407 = vand.u32 %v116, 4294901760
      %v408 = vsub.f32 %v116, %v407
      %v409 = vand.u32 %v408, 4294901760
      %410 = vmatpush.msra.mxu0 %v409
      %v411 = vand.u32 %v115, 4294901760
      %v412 = vsub.f32 %v115, %v411
      %v413 = vand.u32 %v412, 4294901760
      %414 = vmatpush.msra.mxu0 %v413
      %v415 = vand.u32 %v114, 4294901760
      %v416 = vsub.f32 %v114, %v415
      %v417 = vand.u32 %v416, 4294901760
      %418 = vmatpush.msra.mxu0 %v417
      %v419 = vand.u32 %v113, 4294901760
      %v420 = vsub.f32 %v113, %v419
      %v421 = vand.u32 %v420, 4294901760
      %422 = vmatpush.msra.mxu0 %v421
      %v423 = vand.u32 %v112, 4294901760
      %v424 = vsub.f32 %v112, %v423
      %v425 = vand.u32 %v424, 4294901760
      %426 = vmatpush.msra.mxu0 %v425
      %v427 = vand.u32 %v111, 4294901760
      %428 = vmatmul.f32.gmra.mxu0 %v427
      %v429 = vpop.f32.mrf.mxu0
      %v430 = vadd.f32 %v361, %v429
      %431 = vdwg.mxu0
      %v432 = vand.u32 %v127, 4294901760
      %433 = vmatpush.msra.mxu0 %v432
      %v434 = vand.u32 %v126, 4294901760
      %435 = vmatpush.msra.mxu0 %v434
      %v436 = vand.u32 %v125, 4294901760
      %437 = vmatpush.msra.mxu0 %v436
      %v438 = vand.u32 %v124, 4294901760
      %439 = vmatpush.msra.mxu0 %v438
      %v440 = vand.u32 %v123, 4294901760
      %441 = vmatpush.msra.mxu0 %v440
      %v442 = vand.u32 %v122, 4294901760
      %443 = vmatpush.msra.mxu0 %v442
      %v444 = vand.u32 %v121, 4294901760
      %445 = vmatpush.msra.mxu0 %v444
      %v446 = vand.u32 %v120, 4294901760
      %447 = vmatpush.msra.mxu0 %v446
      %v448 = vand.u32 %v119, 4294901760
      %449 = vmatpush.msra.mxu0 %v448
      %v450 = vand.u32 %v118, 4294901760
      %451 = vmatpush.msra.mxu0 %v450
      %v452 = vand.u32 %v117, 4294901760
      %453 = vmatpush.msra.mxu0 %v452
      %v454 = vand.u32 %v116, 4294901760
      %455 = vmatpush.msra.mxu0 %v454
      %v456 = vand.u32 %v115, 4294901760
      %457 = vmatpush.msra.mxu0 %v456
      %v458 = vand.u32 %v114, 4294901760
      %459 = vmatpush.msra.mxu0 %v458
      %v460 = vand.u32 %v113, 4294901760
      %461 = vmatpush.msra.mxu0 %v460
      %v462 = vand.u32 %v112, 4294901760
      %463 = vmatpush.msra.mxu0 %v462
      %v464 = vand.u32 %v111, 4294901760
      %465 = vmatmul.f32.gmra.mxu0 %v464
      %v466 = vpop.f32.mrf.mxu0
      %v467 = vadd.f32 %v430, %v466
      %468 = vdwg.mxu0
      %v469 = vrsqrt.pop %v467
      %v470 = vmul.f32 %v469, %v467
      %v471 = vmul.f32 %v470, %v469
      %v472 = vmul.f32 0.5, %v471
      %v473 = vsub.f32 1.5, %v472
      %v474 = vmul.f32 %v469, %v473
      %v475 = vmul.f32 %v467, %v474
      %vm476 = vcmp.eq.f32.partialorder %v467, inf
      %v477 = vsel %vm476, %v467, %v475
      %vm478 = vcmp.eq.f32.partialorder %v467, 0.0
      %v479 = vand.u32 %v467, 2147483648
      %v480 = vsel %vm478, %v479, %v477
      %v481 = vadd.f32 %v480, 1e-09
      %v482 = vrsqrt.pop %v481
      %v483 = vmul.f32 %v482, %v481
      %v484 = vmul.f32 %v483, %v482
      %v485 = vmul.f32 0.5, %v484
      %v486 = vsub.f32 1.5, %v485
      %v487 = vmul.f32 %v482, %v486
      %v488 = vmul.f32 %v481, %v487
      %vm489 = vcmp.eq.f32.partialorder %v481, inf
      %v490 = vsel %vm489, %v481, %v488
      %vm491 = vcmp.eq.f32.partialorder %v481, 0.0
      %v492 = vand.u32 %v481, 2147483648
      %v493 = vsel %vm491, %v492, %v490
      %v494 = vsub.f32 2.0, %v493
      %v495 = vmax.f32 %v494, 0.0
      %v496 = vld [vmem:[%s92] sm:$0x1]
      %v497 = vunpack.c.l.bf16 %v496
      %v498 = vmul.f32 %v497, %v480
      %v499 = vsub.f32 1.0, %v497
      %v500 = vmul.f32 %v495, %v495
      %v501 = vmul.f32 %v499, %v500
      %v502 = vadd.f32 %v498, %v501
      %v503 = vld [vmem:[#allocation2] sm:$0x1]
      %vm504 = vcmask 25600
      %v505 = vsel %vm504, %v502, 0.0
      %v506 = vrot.slane %v505, 4
      %v507 = vadd.f32 %v505, %v506
      %v508 = vrot.slane %v507, 2
      %v509 = vadd.f32 %v507, %v508
      %v510 = vrot.slane %v509, 1
      %v511 = vadd.f32 %v509, %v510
      %v512 = vadd.f32 %v503, %v511
      %vm513 = vcmask 24576
      %514 = vst.msk [vmem:[#allocation2] sm:$0x1] %vm513, %v512
    $region25: #{tpu_custom_call.1} parent=1 // pred_fallthru
      _
    // Predicated region
    $region26: #{tpu_custom_call.1} parent=1 // pred_check
      %p515 = pneg %p96
    $region27: #{tpu_custom_call.1} parent=1 // pred_check_branch
      %517 = sbr.rel (%p515) target = $region29
    $region28: #{tpu_custom_call.1} parent=1 // pred_region
      %518 = vst [vmem:[#allocation3] sm:$0xff] 0.0
      %v519 = vld [vmem:[#allocation2] sm:$0x1]
      %vm520 = vcmask 24576
      %521 = vst.msk [vmem:[#allocation3] sm:$0x1] %vm520, %v519
    $region29: #{tpu_custom_call.1} parent=1 // pred_fallthru
      _
    // Predicated region
    $region30: #{tpu_custom_call.1} parent=1 // pred_check
      _
    $region31: #{tpu_custom_call.1} parent=1 // pred_check_branch
      %523 = sbr.rel (0) target = $region33
    $region32: #{tpu_custom_call.1} parent=1 // pred_region
      %525 = vsyncadd [#allocation4], 0
      %s527 = sshll.u32 [#allocation3], 4
      %s528 = int_to_ptr.vmem [resolvable:$true] %s527
      %s529 = sshll.u32 %s4, 4
      %s530 = int_to_ptr.hbm [resolvable:$true] %s529
      %532 = dma.vmem_to_hbm [thread:$0]  %s528, 128, %s530, [#allocation4]
    $region33: #{tpu_custom_call.1} parent=1 // pred_fallthru
      _
    // Predicated region
    $region34: #{tpu_custom_call.1} parent=1 // pred_check
      _
    $region35: #{tpu_custom_call.1} parent=1 // pred_check_branch
      %534 = sbr.rel (0) target = $region37
    $region36: #{tpu_custom_call.1} parent=1 // pred_region
      %536 = dma.done [#allocation4], 128
    $region37: #{tpu_custom_call.1} parent=1 // pred_fallthru
      _
    %537 = vsyncpa [#allocation4], 1

</llo_original>
